<compile_context>
chip_gen: v5e
topology: v5e:2x2
jax: 0.10.0
libtpu: 0.0.40
codegen_flags: <defaults>
</compile_context>

<pallas_src>
import functools

import jax
import jax.numpy as jnp
from jax.experimental import pallas as pl
from jax.experimental.pallas import tpu as pltpu

LN_EPS = 1e-5        # PyTorch nn.LayerNorm default
NEG_LARGE = -1e30    # finite -inf surrogate (avoids inf-inf NaNs on fully masked tiles)


def _round_up(x, m):
    return ((x + m - 1) // m) * m


def _vmem_capacity_bytes():
    try:
        return int(pltpu.get_tpu_info().vmem_capacity_bytes)
    except Exception:
        return 64 * 1024 * 1024  # conservative (v7x physical VMEM per TC)


def _choose_tile(hw, per_lane_bytes, budget_bytes, max_tile):
    """Largest multiple-of-128 HW tile fitting the VMEM budget (capped by hw / max_tile)."""
    want = min(_round_up(hw, 128), _round_up(max_tile, 128))
    fit = max((budget_bytes // max(per_lane_bytes, 1)) // 128 * 128, 128)
    return max(min(want, fit), 128)


# --------------------------------------------------------------------------------------
# Pass A: per-(batch, HW-split) online-softmax context partials.
#   ye = [W1 ; wm@W1] @ x  (bias deferred);  logits = ye[Cout_p];  y = ye[:Cout_p]
#   partial outputs per split: acc = sum exp(logit - m) * y,  l = sum exp(logit - m),  m.
# --------------------------------------------------------------------------------------
def context_kernel(x_ref, w1e_ref, pacc_ref, pml_ref, m_sc, l_sc, acc_sc, *,
                   hw, tile_w, tiles_per_split, cin, cout_p, mask_needed, use_vpu_proj):
    s = pl.program_id(1)
    k = pl.program_id(2)
    nk = pl.num_programs(2)

    @pl.when(k == 0)
    def _():
        m_sc[...] = jnp.full_like(m_sc, NEG_LARGE)
        l_sc[...] = jnp.zeros_like(l_sc)
        acc_sc[...] = jnp.zeros_like(acc_sc)

    x = x_ref[0]                                          # (Cin, TW) f32

    if mask_needed:
        lane = jax.lax.broadcasted_iota(jnp.int32, (1, tile_w), 1)
        g = s * tiles_per_split + k                       # global HW-tile index
        valid = (g * tile_w + lane) < hw                  # (1, TW)
        x = jnp.where(valid, x, 0.0)                      # Inf/NaN guard for OOB pad garbage

    # Projection with the folded mask-logits row (opt 1).
    w1e = w1e_ref[...]                                    # (Cout_ext, Cin)
    if use_vpu_proj:
        # Small-K fast path (opt 3): Cin broadcast FMAs on the VPU.
        ye = w1e[:, 0:1] * x[0:1, :]
        for c in range(1, cin):
            ye = ye + w1e[:, c:c + 1] * x[c:c + 1, :]
    else:
        ye = jnp.dot(w1e, x, preferred_element_type=jnp.float32)

    y = ye[:cout_p, :]                                    # (Cout_p, TW) projection (no bias)
    logits = ye[cout_p:cout_p + 1, :]                     # (1, TW)  folded mask logits
    if mask_needed:
        logits = jnp.where(valid, logits, NEG_LARGE)

    # Online softmax over the HW (lane) axis.
    m_old = m_sc[...]                                                      # (1, 1)
    m_new = jnp.maximum(m_old, jnp.max(logits, axis=1, keepdims=True))
    alpha = jnp.exp(m_old - m_new)
    p = jnp.exp(logits - m_new)                                            # (1, TW)
    if mask_needed:
        p = jnp.where(valid, p, 0.0)    # required: fully-masked tiles must contribute 0
    l_sc[...] = alpha * l_sc[...] + jnp.sum(p, axis=1, keepdims=True)

    # Context accumulation on the VPU with a lane-wide accumulator (opt 2) — the MXU is
    # left free; the 128-lane reduction is deferred to the last step of the split.
    delta = y[:, 0:128] * p[:, 0:128]
    for j in range(1, tile_w // 128):
        lo = j * 128
        delta = delta + y[:, lo:lo + 128] * p[:, lo:lo + 128]
    acc_sc[...] = alpha * acc_sc[...] + delta
    m_sc[...] = m_new

    @pl.when(k == nk - 1)
    def _():
        ctx = jnp.sum(acc_sc[...], axis=1, keepdims=True)                  # (Cout_p, 1)
        pacc_ref[0, 0] = ctx
        pml_ref[0, 0] = jnp.concatenate([m_sc[...], l_sc[...]], axis=1)    # (1, 2)


# --------------------------------------------------------------------------------------
# Merge kernel (grid=(B,)): log-sum-exp combine of the per-split partials + channel-add
# transform (conv1x1 -> LayerNorm -> ReLU -> conv1x1).  Emits tpb = t + b1.
# --------------------------------------------------------------------------------------
def merge_kernel(pacc_ref, pml_ref, wa1_ref, wa2_ref, cb_ref, hb_ref, tpb_ref):
    pacc = pacc_ref[0]                                     # (nsplit, Cout_p, 1)
    pml = pml_ref[0]                                       # (nsplit, 1, 2)
    m_s = pml[:, :, 0:1]                                   # (nsplit, 1, 1)
    l_s = pml[:, :, 1:2]
    m_g = jnp.max(m_s, axis=0, keepdims=True)              # (1, 1, 1)
    scale = jnp.exp(m_s - m_g)                             # (nsplit, 1, 1)
    l_g = jnp.sum(scale * l_s, axis=0)                     # (1, 1)
    acc = jnp.sum(pacc * scale, axis=0)                    # (Cout_p, 1)

    cb = cb_ref[...]                                       # (Cout_p, 2): [b1, ba2]
    b1 = cb[:, 0:1]
    ctx = acc * pl.reciprocal(l_g, approx=False) + b1      # (Cout_p, 1); deferred b1 added here

    hb = hb_ref[...]                                       # (Hid, 3): [ba1, gamma, beta]
    h = jnp.dot(wa1_ref[...], ctx, preferred_element_type=jnp.float32) + hb[:, 0:1]
    mu = jnp.mean(h, axis=0, keepdims=True)
    var = jnp.mean((h - mu) * (h - mu), axis=0, keepdims=True)
    hn = (h - mu) * jax.lax.rsqrt(var + LN_EPS) * hb[:, 1:2] + hb[:, 2:3]
    hr = jnp.maximum(hn, 0.0)
    t = jnp.dot(wa2_ref[...], hr, preferred_element_type=jnp.float32) + cb[:, 1:2]
    tpb_ref[0] = t + b1                                    # (Cout_p, 1); pass B adds to W1@x


# --------------------------------------------------------------------------------------
# Pass B: per-tile projection + broadcast residual add, lane-dense output stores.
# --------------------------------------------------------------------------------------
def project_add_kernel(x_ref, w1_ref, tpb_ref, out_ref, *, cin, use_vpu_proj):
    x = x_ref[0]                                           # (Cin, TW)
    w1 = w1_ref[...]                                       # (Cout, Cin)
    if use_vpu_proj:
        y = w1[:, 0:1] * x[0:1, :]
        for c in range(1, cin):
            y = y + w1[:, c:c + 1] * x[c:c + 1, :]
    else:
        y = jnp.dot(w1, x, preferred_element_type=jnp.float32)
    out_ref[0] = (y + tpb_ref[0]).astype(out_ref.dtype)    # W1@x + (t + b1)


def proj_attention_pallas(x_nchw, params, max_tile_a=None, max_tile_b=None):
    """x_nchw: [B, Cin, H, W] float32. Returns [B, Cout, H, W]."""
    B, Cin, H, W = x_nchw.shape
    HW = H * W
    w1, b1, wm, bm, wa1, ba1, gamma, beta, wa2, ba2 = params
    Cout = w1.shape[0]
    Hid = wa1.shape[0]
    f32 = jnp.float32

    Cout_p = _round_up(Cout, 8)      # sublane-aligned channel count
    Cout_ext = Cout_p + 8            # + one sublane tile holding the folded logits row

    # ---- one-time (tiny) weight prep in the wrapper ----
    w1_m = w1.reshape(Cout, Cin).astype(f32)
    wm_m = wm.reshape(1, Cout).astype(f32)
    w1e = jnp.zeros((Cout_ext, Cin), f32)
    w1e = w1e.at[:Cout, :].set(w1_m)
    w1e = w1e.at[Cout_p, :].set((wm_m @ w1_m)[0])   # folded mask row; wm@b1 + bm cancels
    b1p = jnp.zeros((Cout_p,), f32).at[:Cout].set(b1)
    ba2p = jnp.zeros((Cout_p,), f32).at[:Cout].set(ba2)
    cbp = jnp.stack([b1p, ba2p], axis=1)                            # (Cout_p, 2)
    hb = jnp.stack([ba1, gamma, beta], axis=1).astype(f32)          # (Hid, 3)
    wa1p = jnp.zeros((Hid, Cout_p), f32).at[:, :Cout].set(wa1.reshape(Hid, Cout))
    wa2p = jnp.zeros((Cout_p, Hid), f32).at[:Cout, :].set(wa2.reshape(Cout, Hid))

    # [B, C, HW] layout: pure reshape of NCHW (no transpose).
    x_bchw = x_nchw.reshape(B, Cin, HW).astype(f32)

    # ---- chip-aware tiling / VMEM budget (opts 4, 6, 7) ----
    cap = _vmem_capacity_bytes()
    budget = int(cap * 0.40)                  # tile-sizing budget (leave pipelining headroom)
    vmem_limit = int(cap * 0.75)              # explicit scoped-VMEM limit
    per_lane_a = 4 * (3 * Cin + 2 * Cout_ext + 8)      # x (2-buf) + ye + temps, per HW lane
    fixed_a = 4 * (2 * Cout_ext * Cin + Cout_p * 128) + (64 << 10)
    per_lane_b = 4 * (3 * Cin + 3 * Cout + 8)          # x (2-buf) + out (2-buf) + y temp
    fixed_b = 4 * (2 * Cout * Cin + Cout_p) + (64 << 10)
    cap_a = 16384 if max_tile_a is None else max_tile_a
    cap_b = 8192 if max_tile_b is None else max_tile_b
    tile_a = _choose_tile(HW, per_lane_a, max(budget - fixed_a, 1 << 20), cap_a)
    tile_b = _choose_tile(HW, per_lane_b, max(budget - fixed_b, 1 << 20), cap_b)

    n_tiles_a = -(-HW // tile_a)
    nsplit = min(2, n_tiles_a)                 # HW split -> both v7x TCs even at B=1 (opt 5)
    tps = -(-n_tiles_a // nsplit)              # tiles per split
    mask_needed = (nsplit * tps * tile_a) != HW
    n_tiles_b = -(-HW // tile_b)
    use_vpu = Cin <= 32                        # opt 3 threshold

    # ---- Pass A: per-(batch, split) online-softmax partials ----
    kern_a = functools.partial(
        context_kernel, hw=HW, tile_w=tile_a, tiles_per_split=tps, cin=Cin,
        cout_p=Cout_p, mask_needed=mask_needed, use_vpu_proj=use_vpu)
    pacc, pml = pl.pallas_call(
        kern_a,
        out_shape=(jax.ShapeDtypeStruct((B, nsplit, Cout_p, 1), f32),
                   jax.ShapeDtypeStruct((B, nsplit, 1, 2), f32)),
        grid_spec=pltpu.PrefetchScalarGridSpec(
            num_scalar_prefetch=0,
            grid=(B, nsplit, tps),
            in_specs=[
                pl.BlockSpec((1, Cin, tile_a),
                             lambda b, s, k: (b, 0, jnp.minimum(s * tps + k, n_tiles_a - 1))),
                pl.BlockSpec((Cout_ext, Cin), lambda b, s, k: (0, 0)),
            ],
            out_specs=[
                pl.BlockSpec((1, 1, Cout_p, 1), lambda b, s, k: (b, s, 0, 0)),
                pl.BlockSpec((1, 1, 1, 2), lambda b, s, k: (b, s, 0, 0)),
            ],
            scratch_shapes=[
                pltpu.VMEM((1, 1), f32),          # running max
                pltpu.VMEM((1, 1), f32),          # running sum
                pltpu.VMEM((Cout_p, 128), f32),   # lane-wide context accumulator
            ]),
        compiler_params=pltpu.CompilerParams(
            dimension_semantics=("parallel", "parallel", "arbitrary"),
            vmem_limit_bytes=vmem_limit),
    )(x_bchw, w1e)

    # ---- Merge: LSE combine of split partials + channel-add MLP -> tpb = t + b1 ----
    tpb_p = pl.pallas_call(
        merge_kernel,
        out_shape=jax.ShapeDtypeStruct((B, Cout_p, 1), f32),
        grid_spec=pltpu.PrefetchScalarGridSpec(
            num_scalar_prefetch=0,
            grid=(B,),
            in_specs=[
                pl.BlockSpec((1, nsplit, Cout_p, 1), lambda b: (b, 0, 0, 0)),
                pl.BlockSpec((1, nsplit, 1, 2), lambda b: (b, 0, 0, 0)),
                pl.BlockSpec((Hid, Cout_p), lambda b: (0, 0)),
                pl.BlockSpec((Cout_p, Hid), lambda b: (0, 0)),
                pl.BlockSpec((Cout_p, 2), lambda b: (0, 0)),
                pl.BlockSpec((Hid, 3), lambda b: (0, 0)),
            ],
            out_specs=pl.BlockSpec((1, Cout_p, 1), lambda b: (b, 0, 0)),
        ),
        compiler_params=pltpu.CompilerParams(dimension_semantics=("parallel",)),
    )(pacc, pml, wa1p, wa2p, cbp, hb)
    tpb = tpb_p[:, :Cout, :]                                     # strip channel padding

    # ---- Pass B: projection + broadcast residual add (fully parallel, lane-dense) ----
    kern_b = functools.partial(project_add_kernel, cin=Cin, use_vpu_proj=use_vpu)
    out_bchw = pl.pallas_call(
        kern_b,
        out_shape=jax.ShapeDtypeStruct((B, Cout, HW), x_nchw.dtype),
        grid_spec=pltpu.PrefetchScalarGridSpec(
            num_scalar_prefetch=0,
            grid=(B, n_tiles_b),
            in_specs=[
                pl.BlockSpec((1, Cin, tile_b), lambda b, k: (b, 0, k)),
                pl.BlockSpec((Cout, Cin), lambda b, k: (0, 0)),
                pl.BlockSpec((1, Cout, 1), lambda b, k: (b, 0, 0)),
            ],
            out_specs=pl.BlockSpec((1, Cout, tile_b), lambda b, k: (b, 0, k)),
        ),
        compiler_params=pltpu.CompilerParams(
            dimension_semantics=("parallel", "parallel"),
            vmem_limit_bytes=vmem_limit),
    )(x_bchw, w1_m, tpb)

    return out_bchw.reshape(B, Cout, H, W)


# --------------------------------------------------------------------------------------
# Pure-JAX reference mirroring the PyTorch forward, for verification.
# --------------------------------------------------------------------------------------
def proj_attention_ref(x_nchw, params):
    B, Cin, H, W = x_nchw.shape
    HW = H * W
    w1, b1, wm, bm, wa1, ba1, gamma, beta, wa2, ba2 = params
    Cout = w1.shape[0]
    Hid = wa1.shape[0]

    xf = x_nchw.reshape(B, Cin, HW)
    y = jnp.einsum('oc,bcs->bos', w1.reshape(Cout, Cin), xf) + b1[None, :, None]
    logits = jnp.einsum('oc,bcs->bos', wm.reshape(1, Cout), y) + bm[None, :, None]
    p = jax.nn.softmax(logits, axis=2)
    ctx = jnp.einsum('bcs,bos->bc', y, p)
    h = ctx @ wa1.reshape(Hid, Cout).T + ba1
    mu = jnp.mean(h, axis=1, keepdims=True)
    var = jnp.mean((h - mu) ** 2, axis=1, keepdims=True)
    hn = (h - mu) / jnp.sqrt(var + LN_EPS) * gamma + beta
    hr = jnp.maximum(hn, 0.0)
    t = hr @ wa2.reshape(Cout, Hid).T + ba2
    out = y + t[:, :, None]
    return out.reshape(B, Cout, H, W)


def make_params(key, in_channel, out_channel, ratio=4):
    hid = max(out_channel // ratio, 1)
    ks = jax.random.split(key, 10)
    s = 0.1
    w1 = s * jax.random.normal(ks[0], (out_channel, in_channel, 1, 1), jnp.float32)
    b1 = s * jax.random.normal(ks[1], (out_channel,), jnp.float32)
    wm = s * jax.random.normal(ks[2], (1, out_channel, 1, 1), jnp.float32)
    bm = s * jax.random.normal(ks[3], (1,), jnp.float32)
    wa1 = s * jax.random.normal(ks[4], (hid, out_channel, 1, 1), jnp.float32)
    ba1 = s * jax.random.normal(ks[5], (hid,), jnp.float32)
    gamma = 1.0 + s * jax.random.normal(ks[6], (hid,), jnp.float32)
    beta = s * jax.random.normal(ks[7], (hid,), jnp.float32)
    wa2 = s * jax.random.normal(ks[8], (out_channel, hid, 1, 1), jnp.float32)
    ba2 = s * jax.random.normal(ks[9], (out_channel,), jnp.float32)
    return (w1, b1, wm, bm, wa1, ba1, gamma, beta, wa2, ba2)


if __name__ == "__main__":
    key = jax.random.PRNGKey(0)
    kx, kp, kx2, kp2 = jax.random.split(key, 4)

    # Test 1: canonical small shape (single HW tile, single split).
    B, Cin, H, W, Cout = 2, 4, 16, 16, 32
    x = jax.random.normal(kx, (B, Cin, H, W), jnp.float32)
    params = make_params(kp, Cin, Cout, ratio=4)
    out = jax.block_until_ready(proj_attention_pallas(x, params))
    ref = jax.block_until_ready(proj_attention_ref(x, params))
    assert out.shape == (B, Cout, H, W)
    assert jnp.allclose(out, ref, atol=1e-4, rtol=1e-4)

    # Test 2: multi-tile online softmax, 2-way HW split with an uneven (fully masked)
    # trailing tile, masked tail lanes, channel padding (Cout=20 -> 24), partial pass-B
    # edge-block writeback.
    B2, Cin2, H2, W2, Cout2 = 1, 8, 15, 20, 20
    x2 = jax.random.normal(kx2, (B2, Cin2, H2, W2), jnp.float32)
    params2 = make_params(kp2, Cin2, Cout2, ratio=4)
    out2 = jax.block_until_ready(
        proj_attention_pallas(x2, params2, max_tile_a=128, max_tile_b=128))
    ref2 = jax.block_until_ready(proj_attention_ref(x2, params2))
    assert out2.shape == (B2, Cout2, H2, W2)
    assert jnp.allclose(out2, ref2, atol=1e-4, rtol=1e-4)

    print("KERNEL_OK")
</pallas_src>

<mosaic_0001>
module attributes {stable_mosaic.version = 11 : i64} {
  func.func @context_kernel(%arg0: i32, %arg1: i32, %arg2: i32, %arg3: memref<1x4x256xf32, #tpu.memory_space<vmem>>, %arg4: memref<40x4xf32, #tpu.memory_space<vmem>>, %arg5: memref<1x1x32x1xf32, #tpu.memory_space<vmem>>, %arg6: memref<1x1x1x2xf32, #tpu.memory_space<vmem>>, %arg7: memref<1x1xf32, #tpu.memory_space<vmem>>, %arg8: memref<1x1xf32, #tpu.memory_space<vmem>>, %arg9: memref<32x128xf32, #tpu.memory_space<vmem>>) attributes {dimension_semantics = [#tpu.dimension_semantics<parallel>, #tpu.dimension_semantics<parallel>, #tpu.dimension_semantics<arbitrary>], iteration_bounds = array<i64: 2, 1, 1>, scalar_prefetch = 0 : i64, scratch_operands = 3 : i64, tpu.core_type = #tpu.core_type<tc>, window_params = [{transform_indices = @transform_0, window_bounds = array<i64: 1, 4, 256>}, {pipeline_mode = #tpu.pipeline_mode<synchronous>, transform_indices = @transform_1, window_bounds = array<i64: 40, 4>}, {transform_indices = @transform_2, window_bounds = array<i64: 1, 1, 32, 1>}, {transform_indices = @transform_3, window_bounds = array<i64: 1, 1, 1, 2>}]} {
    %c0_i32 = arith.constant 0 : i32
    %0 = arith.cmpi eq, %arg2, %c0_i32 : i32
    %1 = arith.extui %0 : i1 to i32
    %c0_i32_0 = arith.constant 0 : i32
    %2 = arith.cmpi ne, %1, %c0_i32_0 : i32
    scf.if %2 {
      %cst_20 = arith.constant -1.000000e+30 : f32
      %64 = vector.broadcast %cst_20 : f32 to vector<1x1xf32>
      %c0_21 = arith.constant 0 : index
      %c0_22 = arith.constant 0 : index
      %65 = vector.load %arg7[%c0_21, %c0_22] : memref<1x1xf32, #tpu.memory_space<vmem>>, vector<1x1xf32>
      tpu.vector_store %arg7[%c0_21, %c0_22], %64 {strides = array<i32>} : memref<1x1xf32, #tpu.memory_space<vmem>>, vector<1x1xf32>,
      %cst_23 = arith.constant 0.000000e+00 : f32
      %66 = vector.broadcast %cst_23 : f32 to vector<1x1xf32>
      %c0_24 = arith.constant 0 : index
      %c0_25 = arith.constant 0 : index
      %67 = vector.load %arg8[%c0_24, %c0_25] : memref<1x1xf32, #tpu.memory_space<vmem>>, vector<1x1xf32>
      tpu.vector_store %arg8[%c0_24, %c0_25], %66 {strides = array<i32>} : memref<1x1xf32, #tpu.memory_space<vmem>>, vector<1x1xf32>,
      %cst_26 = arith.constant 0.000000e+00 : f32
      %68 = vector.broadcast %cst_26 : f32 to vector<32x128xf32>
      %c0_27 = arith.constant 0 : index
      %c0_28 = arith.constant 0 : index
      %69 = vector.load %arg9[%c0_27, %c0_28] : memref<32x128xf32, #tpu.memory_space<vmem>>, vector<32x128xf32>
      tpu.vector_store %arg9[%c0_27, %c0_28], %68 {strides = array<i32>} : memref<32x128xf32, #tpu.memory_space<vmem>>, vector<32x128xf32>,
    } else {
    }
    %c0 = arith.constant 0 : index
    %c0_1 = arith.constant 0 : index
    %c0_2 = arith.constant 0 : index
    %3 = vector.load %arg3[%c0, %c0_1, %c0_2] : memref<1x4x256xf32, #tpu.memory_space<vmem>>, vector<1x4x256xf32>
    %4 = vector.shape_cast %3 : vector<1x4x256xf32> to vector<4x256xf32>
    %c0_3 = arith.constant 0 : index
    %c0_4 = arith.constant 0 : index
    %5 = vector.load %arg4[%c0_3, %c0_4] : memref<40x4xf32, #tpu.memory_space<vmem>>, vector<40x4xf32>
    %6 = vector.extract_strided_slice %5 {offsets = [0, 0], sizes = [40, 1], strides = [1, 1]} : vector<40x4xf32> to vector<40x1xf32>
    %7 = vector.extract_strided_slice %4 {offsets = [0, 0], sizes = [1, 256], strides = [1, 1]} : vector<4x256xf32> to vector<1x256xf32>
    %8 = vector.broadcast %6 : vector<40x1xf32> to vector<40x256xf32>
    %9 = vector.broadcast %7 : vector<1x256xf32> to vector<40x256xf32>
    %10 = arith.mulf %8, %9 : vector<40x256xf32>
    %11 = vector.extract_strided_slice %5 {offsets = [0, 1], sizes = [40, 1], strides = [1, 1]} : vector<40x4xf32> to vector<40x1xf32>
    %12 = vector.extract_strided_slice %4 {offsets = [1, 0], sizes = [1, 256], strides = [1, 1]} : vector<4x256xf32> to vector<1x256xf32>
    %13 = vector.broadcast %11 : vector<40x1xf32> to vector<40x256xf32>
    %14 = vector.broadcast %12 : vector<1x256xf32> to vector<40x256xf32>
    %15 = arith.mulf %13, %14 : vector<40x256xf32>
    %16 = arith.addf %10, %15 : vector<40x256xf32>
    %17 = vector.extract_strided_slice %5 {offsets = [0, 2], sizes = [40, 1], strides = [1, 1]} : vector<40x4xf32> to vector<40x1xf32>
    %18 = vector.extract_strided_slice %4 {offsets = [2, 0], sizes = [1, 256], strides = [1, 1]} : vector<4x256xf32> to vector<1x256xf32>
    %19 = vector.broadcast %17 : vector<40x1xf32> to vector<40x256xf32>
    %20 = vector.broadcast %18 : vector<1x256xf32> to vector<40x256xf32>
    %21 = arith.mulf %19, %20 : vector<40x256xf32>
    %22 = arith.addf %16, %21 : vector<40x256xf32>
    %23 = vector.extract_strided_slice %5 {offsets = [0, 3], sizes = [40, 1], strides = [1, 1]} : vector<40x4xf32> to vector<40x1xf32>
    %24 = vector.extract_strided_slice %4 {offsets = [3, 0], sizes = [1, 256], strides = [1, 1]} : vector<4x256xf32> to vector<1x256xf32>
    %25 = vector.broadcast %23 : vector<40x1xf32> to vector<40x256xf32>
    %26 = vector.broadcast %24 : vector<1x256xf32> to vector<40x256xf32>
    %27 = arith.mulf %25, %26 : vector<40x256xf32>
    %28 = arith.addf %22, %27 : vector<40x256xf32>
    %29 = vector.extract_strided_slice %28 {offsets = [0, 0], sizes = [32, 256], strides = [1, 1]} : vector<40x256xf32> to vector<32x256xf32>
    %30 = vector.extract_strided_slice %28 {offsets = [32, 0], sizes = [1, 256], strides = [1, 1]} : vector<40x256xf32> to vector<1x256xf32>
    %c0_5 = arith.constant 0 : index
    %c0_6 = arith.constant 0 : index
    %31 = vector.load %arg7[%c0_5, %c0_6] : memref<1x1xf32, #tpu.memory_space<vmem>>, vector<1x1xf32>
    %cst = arith.constant dense<0xFF800000> : vector<1xf32>
    %32 = vector.multi_reduction <maximumf>, %30, %cst [1] : vector<1x256xf32> to vector<1xf32>
    %33 = vector.shape_cast %32 : vector<1xf32> to vector<1x1xf32>
    %34 = arith.maximumf %31, %33 : vector<1x1xf32>
    %35 = arith.subf %31, %34 : vector<1x1xf32>
    %36 = math.exp %35 : vector<1x1xf32>
    %37 = vector.broadcast %34 : vector<1x1xf32> to vector<1x256xf32>
    %38 = arith.subf %30, %37 : vector<1x256xf32>
    %39 = math.exp %38 : vector<1x256xf32>
    %c0_7 = arith.constant 0 : index
    %c0_8 = arith.constant 0 : index
    %40 = vector.load %arg8[%c0_7, %c0_8] : memref<1x1xf32, #tpu.memory_space<vmem>>, vector<1x1xf32>
    %41 = arith.mulf %36, %40 : vector<1x1xf32>
    %cst_9 = arith.constant dense<0.000000e+00> : vector<1xf32>
    %42 = vector.multi_reduction <add>, %39, %cst_9 [1] : vector<1x256xf32> to vector<1xf32>
    %43 = vector.shape_cast %42 : vector<1xf32> to vector<1x1xf32>
    %44 = arith.addf %41, %43 : vector<1x1xf32>
    %c0_10 = arith.constant 0 : index
    %c0_11 = arith.constant 0 : index
    %45 = vector.load %arg8[%c0_10, %c0_11] : memref<1x1xf32, #tpu.memory_space<vmem>>, vector<1x1xf32>
    tpu.vector_store %arg8[%c0_10, %c0_11], %44 {strides = array<i32>} : memref<1x1xf32, #tpu.memory_space<vmem>>, vector<1x1xf32>,
    %46 = vector.extract_strided_slice %29 {offsets = [0, 0], sizes = [32, 128], strides = [1, 1]} : vector<32x256xf32> to vector<32x128xf32>
    %47 = vector.extract_strided_slice %39 {offsets = [0, 0], sizes = [1, 128], strides = [1, 1]} : vector<1x256xf32> to vector<1x128xf32>
    %48 = vector.broadcast %47 : vector<1x128xf32> to vector<32x128xf32>
    %49 = arith.mulf %46, %48 : vector<32x128xf32>
    %50 = vector.extract_strided_slice %29 {offsets = [0, 128], sizes = [32, 128], strides = [1, 1]} : vector<32x256xf32> to vector<32x128xf32>
    %51 = vector.extract_strided_slice %39 {offsets = [0, 128], sizes = [1, 128], strides = [1, 1]} : vector<1x256xf32> to vector<1x128xf32>
    %52 = vector.broadcast %51 : vector<1x128xf32> to vector<32x128xf32>
    %53 = arith.mulf %50, %52 : vector<32x128xf32>
    %54 = arith.addf %49, %53 : vector<32x128xf32>
    %c0_12 = arith.constant 0 : index
    %c0_13 = arith.constant 0 : index
    %55 = vector.load %arg9[%c0_12, %c0_13] : memref<32x128xf32, #tpu.memory_space<vmem>>, vector<32x128xf32>
    %56 = vector.broadcast %36 : vector<1x1xf32> to vector<32x128xf32>
    %57 = arith.mulf %56, %55 : vector<32x128xf32>
    %58 = arith.addf %57, %54 : vector<32x128xf32>
    %c0_14 = arith.constant 0 : index
    %c0_15 = arith.constant 0 : index
    %59 = vector.load %arg9[%c0_14, %c0_15] : memref<32x128xf32, #tpu.memory_space<vmem>>, vector<32x128xf32>
    tpu.vector_store %arg9[%c0_14, %c0_15], %58 {strides = array<i32>} : memref<32x128xf32, #tpu.memory_space<vmem>>, vector<32x128xf32>,
    %c0_16 = arith.constant 0 : index
    %c0_17 = arith.constant 0 : index
    %60 = vector.load %arg7[%c0_16, %c0_17] : memref<1x1xf32, #tpu.memory_space<vmem>>, vector<1x1xf32>
    tpu.vector_store %arg7[%c0_16, %c0_17], %34 {strides = array<i32>} : memref<1x1xf32, #tpu.memory_space<vmem>>, vector<1x1xf32>,
    %c0_i32_18 = arith.constant 0 : i32
    %61 = arith.cmpi eq, %arg2, %c0_i32_18 : i32
    %62 = arith.extui %61 : i1 to i32
    %c0_i32_19 = arith.constant 0 : i32
    %63 = arith.cmpi ne, %62, %c0_i32_19 : i32
    scf.if %63 {
      %c0_20 = arith.constant 0 : index
      %c0_21 = arith.constant 0 : index
      %64 = vector.load %arg9[%c0_20, %c0_21] : memref<32x128xf32, #tpu.memory_space<vmem>>, vector<32x128xf32>
      %cst_22 = arith.constant dense<0.000000e+00> : vector<32xf32>
      %65 = vector.multi_reduction <add>, %64, %cst_22 [1] : vector<32x128xf32> to vector<32xf32>
      %66 = vector.shape_cast %65 : vector<32xf32> to vector<32x1xf32>
      %c0_23 = arith.constant 0 : index
      %c0_24 = arith.constant 0 : index
      %c0_25 = arith.constant 0 : index
      %c0_26 = arith.constant 0 : index
      %67 = vector.load %arg5[%c0_23, %c0_24, %c0_25, %c0_26] : memref<1x1x32x1xf32, #tpu.memory_space<vmem>>, vector<1x1x32x1xf32>
      %68 = vector.shape_cast %67 : vector<1x1x32x1xf32> to vector<32x1xf32>
      %69 = vector.shape_cast %66 : vector<32x1xf32> to vector<1x1x32x1xf32>
      tpu.vector_store %arg5[%c0_23, %c0_24, %c0_25, %c0_26], %69 {strides = array<i32>} : memref<1x1x32x1xf32, #tpu.memory_space<vmem>>, vector<1x1x32x1xf32>,
      %c0_27 = arith.constant 0 : index
      %c0_28 = arith.constant 0 : index
      %70 = vector.load %arg7[%c0_27, %c0_28] : memref<1x1xf32, #tpu.memory_space<vmem>>, vector<1x1xf32>
      %c0_29 = arith.constant 0 : index
      %c0_30 = arith.constant 0 : index
      %71 = vector.load %arg8[%c0_29, %c0_30] : memref<1x1xf32, #tpu.memory_space<vmem>>, vector<1x1xf32>
      %72 = tpu.concatenate %70, %71 in 1 : vector<1x1xf32>, vector<1x1xf32> -> vector<1x2xf32>
      %c0_31 = arith.constant 0 : index
      %c0_32 = arith.constant 0 : index
      %c0_33 = arith.constant 0 : index
      %c0_34 = arith.constant 0 : index
      %73 = vector.load %arg6[%c0_31, %c0_32, %c0_33, %c0_34] : memref<1x1x1x2xf32, #tpu.memory_space<vmem>>, vector<1x1x1x2xf32>
      %74 = vector.shape_cast %73 : vector<1x1x1x2xf32> to vector<1x2xf32>
      %75 = vector.shape_cast %72 : vector<1x2xf32> to vector<1x1x1x2xf32>
      tpu.vector_store %arg6[%c0_31, %c0_32, %c0_33, %c0_34], %75 {strides = array<i32>} : memref<1x1x1x2xf32, #tpu.memory_space<vmem>>, vector<1x1x1x2xf32>,
    } else {
    }
    return
  }
  func.func @transform_0(%arg0: i32, %arg1: i32, %arg2: i32) -> (i32, i32, i32) {
    %c1_i32 = arith.constant 1 : i32
    %0 = arith.muli %arg1, %c1_i32 : i32
    %1 = arith.addi %0, %arg2 : i32
    %c0_i32 = arith.constant 0 : i32
    %2 = arith.minsi %1, %c0_i32 : i32
    %c0_i32_0 = arith.constant 0 : i32
    %c0_i32_1 = arith.constant 0 : i32
    return %arg0, %c0_i32_0, %2 : i32, i32, i32
  }
  func.func @transform_1(%arg0: i32, %arg1: i32, %arg2: i32) -> (i32, i32) {
    %c0_i32 = arith.constant 0 : i32
    %c0_i32_0 = arith.constant 0 : i32
    %c0_i32_1 = arith.constant 0 : i32
    return %c0_i32, %c0_i32_0 : i32, i32
  }
  func.func @transform_2(%arg0: i32, %arg1: i32, %arg2: i32) -> (i32, i32, i32, i32) {
    %c0_i32 = arith.constant 0 : i32
    %c0_i32_0 = arith.constant 0 : i32
    %c0_i32_1 = arith.constant 0 : i32
    return %arg0, %arg1, %c0_i32, %c0_i32_0 : i32, i32, i32, i32
  }
  func.func @transform_3(%arg0: i32, %arg1: i32, %arg2: i32) -> (i32, i32, i32, i32) {
    %c0_i32 = arith.constant 0 : i32
    %c0_i32_0 = arith.constant 0 : i32
    %c0_i32_1 = arith.constant 0 : i32
    return %arg0, %arg1, %c0_i32, %c0_i32_0 : i32, i32, i32, i32
  }
}

</mosaic_0001>

<llo_original>
// kernel: tpu_custom_call.1
$region0: #{tpu_custom_call.1}
  #allocation0 [shape = 'u32[]', space=smem, size = 0x4, offset = 0x4, fixed_abs, tag = 'smem constant byte address 0x4 - core index']
  #allocation1 [shape = 'u32[72,128]{1,0:T(1,128)}', space=vmem, size = 0x9000, scoped, tag = 'internal scratch']
  #allocation2 [shape = 'f32[1,1]{1,0:T(1,128)}', space=vmem, size = 0x200, scoped, tag = 'scratch operand']
  #allocation3 [shape = 'f32[1,1]{1,0:T(1,128)}', space=vmem, size = 0x200, scoped, tag = 'scratch operand']
  #allocation4 [shape = 'f32[32,128]{1,0:T(8,128)}', space=vmem, size = 0x4000, scoped, tag = 'scratch operand']
  %s0 = inlined_call_operand.vmem [shape: f32[2,4,256], index: 0, kind: input, shape index: {}]
  %s1 = inlined_call_operand.vmem [shape: f32[40,4], index: 1, kind: input, shape index: {}]
  %s2 = inlined_call_operand.vmem [shape: f32[2,1,32,1], index: 2, kind: output, shape index: {0}]
  %s3 = inlined_call_operand.hbm [shape: f32[2,1,1,2], index: 3, kind: output, shape index: {1}]
  %4 = xla_tuple %s2, %s3
  %s5 = sld [smem:[#allocation0]]
  $region57: #{tpu_custom_call.1} parent=0
    _
  %s7 = ssub.s32 1, %s5
  %s8 = scalar_select 0, %s7, %s5
  $region1: #{tpu_custom_call.1} parent=0
    #allocation5 [shape = 'u8[1024]{0}', space=vmem, size = 0x400, scoped, tag = 'output window, operand 1']
    #allocation6 [shape = 's32[2]{0}', space=sflag, size = 0x8, scoped, tag = 'scoped memory for tpu_custom_call.1']
    %9 = vsyncpa [#allocation6], 0
    %s10 = scalar_lea.sflag [#allocation6], 1
    %11 = vsyncpa %s10, 0
    loop: start=0, step=1, limit=4
    $region2: #{tpu_custom_call.1} parent=1 // loop_pre_header
      _
    $region3: #{tpu_custom_call.1} parent=1 // loop_header
      %s13 = sphi 0, %s17
      %p14 = scmp.ge.s32.totalorder %s13, 4
      %s20 = sphi 0, %s39
      %s21 = sphi 0, %s35
      %s22 = sphi 0, %s31
      %s23 = sphi 0, %s20
      %s24 = sphi 0, %s21
      %s25 = sphi 0, %s22
      %s26 = sphi 0, %s23
      %s27 = sphi 0, %s24
      %s28 = sphi 0, %s25
      %s50 = sphi 0, %s52
      %s53 = sphi 0, %s50
      %s54 = sphi 0, %s53
      %s70 = sphi 0, %s54
      %s74 = sphi 0, %s74
      %s76 = sphi 0, %s74
      %s77 = sphi 0, %s76
      %s91 = sphi 0, %s77
      %s99 = sphi 0, %s101
      %s102 = sphi 0, %s99
      %s103 = sphi 0, %s102
      %s119 = sphi 0, %s103
      %s127 = sphi 0, %s129
      %s130 = sphi 0, %s127
      %s131 = sphi 0, %s130
      %s147 = sphi 0, %s131
    $region4: #{tpu_custom_call.1} parent=1 // loop_header_branch
      %16 = sbr.rel (%p14) target = $region8
    $region5: #{tpu_custom_call.1} parent=1 // loop_body
      %s18 = ssub.s32 %s13, 1
      %s19 = ssub.s32 %s13, 2
      %s29 = sadd.s32 1, %s22
      %p30 = scmp.ge.s32.totalorder %s29, 1
      %s31 = scalar_select %p30, 0, %s29
      %s32 = sadd.s32 1, %s21
      %s33 = scalar_select %p30, %s32, %s21
      %p34 = scmp.ge.s32.totalorder %s33, 1
      %s35 = scalar_select %p34, 0, %s33
      %s36 = sadd.s32 1, %s20
      %s37 = scalar_select %p34, %s36, %s20
      %p38 = scmp.ge.s32.totalorder %s37, 2
      %s39 = scalar_select %p38, 0, %s37
      %s40 = sadd.s32 %s21, %s22
      %p41 = scmp.lt.s32.totalorder %s40, 0
      %s42 = scalar_select %p41, %s40, 0
      %s43 = sadd.s32 %s35, %s31
      %p44 = scmp.lt.s32.totalorder %s43, 0
      %s45 = scalar_select %p44, %s43, 0
      %s46 = ssub.s32 %s20, %s39
      %s47 = ssub.s32 %s42, %s45
      %s48 = sor.u32 %s46, %s47
      %p49 = scmp.eq.s32.totalorder %s48, 0
      %s51 = sadd.s32 %s50, 1
      %s52 = scalar_select %p49, %s50, %s51
      %p55 = pneg %p49
      %p56 = scmp.eq.s32.totalorder %s13, 1
      %p57 = por %p55, %p56
      %p58 = scmp.ne.s32.totalorder %s50, %s53
      %p59 = scmp.eq.s32.totalorder %s13, 0
      %p60 = por %p58, %p59
      %p61 = scmp.ne.s32.totalorder %s50, %s53
      %p62 = scmp.eq.s32.totalorder %s18, 1
      %p63 = por %p61, %p62
      %p64 = scmp.ne.s32.totalorder %s53, %s54
      %p65 = scmp.eq.s32.totalorder %s18, 0
      %p66 = por %p64, %p65
      %p67 = scmp.ne.s32.totalorder %s53, %s54
      %p68 = scmp.eq.s32.totalorder %s19, 1
      %p69 = por %p67, %p68
      %p71 = scmp.ne.s32.totalorder %s54, %s70
      %p72 = scmp.eq.s32.totalorder %s19, 0
      %p73 = por %p71, %p72
      %s75 = sadd.s32 %s74, 1
      %p78 = scmp.eq.s32.totalorder %s13, 1
      %p79 = scmp.ne.s32.totalorder %s74, %s76
      %p80 = scmp.eq.s32.totalorder %s13, 0
      %p81 = por %p79, %p80
      %p82 = scmp.ne.s32.totalorder %s74, %s76
      %p83 = scmp.eq.s32.totalorder %s18, 1
      %p84 = por %p82, %p83
      %p85 = scmp.ne.s32.totalorder %s76, %s77
      %p86 = scmp.eq.s32.totalorder %s18, 0
      %p87 = por %p85, %p86
      %p88 = scmp.ne.s32.totalorder %s76, %s77
      %p89 = scmp.eq.s32.totalorder %s19, 1
      %p90 = por %p88, %p89
      %p92 = scmp.ne.s32.totalorder %s77, %s91
      %p93 = scmp.eq.s32.totalorder %s19, 0
      %p94 = por %p92, %p93
      %s95 = ssub.s32 %s20, %s39
      %s96 = ssub.s32 %s21, %s35
      %s97 = sor.u32 %s95, %s96
      %p98 = scmp.eq.s32.totalorder %s97, 0
      %s100 = sadd.s32 %s99, 1
      %s101 = scalar_select %p98, %s99, %s100
      %p104 = pneg %p98
      %p105 = scmp.eq.s32.totalorder %s13, 1
      %p106 = por %p104, %p105
      %p107 = scmp.ne.s32.totalorder %s99, %s102
      %p108 = scmp.eq.s32.totalorder %s13, 0
      %p109 = por %p107, %p108
      %p110 = scmp.ne.s32.totalorder %s99, %s102
      %p111 = scmp.eq.s32.totalorder %s18, 1
      %p112 = por %p110, %p111
      %p113 = scmp.ne.s32.totalorder %s102, %s103
      %p114 = scmp.eq.s32.totalorder %s18, 0
      %p115 = por %p113, %p114
      %p116 = scmp.ne.s32.totalorder %s102, %s103
      %p117 = scmp.eq.s32.totalorder %s19, 1
      %p118 = por %p116, %p117
      %p120 = scmp.ne.s32.totalorder %s103, %s119
      %p121 = scmp.eq.s32.totalorder %s19, 0
      %p122 = por %p120, %p121
      %s123 = ssub.s32 %s20, %s39
      %s124 = ssub.s32 %s21, %s35
      %s125 = sor.u32 %s123, %s124
      %p126 = scmp.eq.s32.totalorder %s125, 0
      %s128 = sadd.s32 %s127, 1
      %s129 = scalar_select %p126, %s127, %s128
      %p132 = pneg %p126
      %p133 = scmp.eq.s32.totalorder %s13, 1
      %p134 = por %p132, %p133
      %p135 = scmp.ne.s32.totalorder %s127, %s130
      %p136 = scmp.eq.s32.totalorder %s13, 0
      %p137 = por %p135, %p136
      %p138 = scmp.ne.s32.totalorder %s127, %s130
      %p139 = scmp.eq.s32.totalorder %s18, 1
      %p140 = por %p138, %p139
      %p141 = scmp.ne.s32.totalorder %s130, %s131
      %p142 = scmp.eq.s32.totalorder %s18, 0
      %p143 = por %p141, %p142
      %p144 = scmp.ne.s32.totalorder %s130, %s131
      %p145 = scmp.eq.s32.totalorder %s19, 1
      %p146 = por %p144, %p145
      %p148 = scmp.ne.s32.totalorder %s131, %s147
      %p149 = scmp.eq.s32.totalorder %s19, 0
      %p150 = por %p148, %p149
      %p151 = scmp.le.s32.totalorder 1, %s13
      %p152 = scmp.lt.s32.totalorder %s13, 3
      %p153 = pnand %p151, %p152
      %p154 = pneg %p153
      // Predicated region
      $region9: #{tpu_custom_call.1} parent=5 // pred_check
        _
      $region10: #{tpu_custom_call.1} parent=5 // pred_check_branch
        %156 = sbr.rel (%p153) target = $region12
      $region11: #{tpu_custom_call.1} parent=5 // pred_region
        %s157 = ssub.s32 %s13, 1
        // Predicated region
        $region13: #{tpu_custom_call.1} parent=11 // pred_check
          %p158 = pneg %p87
        $region14: #{tpu_custom_call.1} parent=11 // pred_check_branch
          %160 = sbr.rel (%p158) target = $region16
        $region15: #{tpu_custom_call.1} parent=11 // pred_region
          _
        $region16: #{tpu_custom_call.1} parent=11 // pred_fallthru
          _
      $region12: #{tpu_custom_call.1} parent=5 // pred_fallthru
        _
      %p161 = scmp.lt.s32.totalorder %s13, 2
      // Predicated region
      $region17: #{tpu_custom_call.1} parent=5 // pred_check
        %p162 = pneg %p161
      $region18: #{tpu_custom_call.1} parent=5 // pred_check_branch
        %164 = sbr.rel (%p162) target = $region20
      $region19: #{tpu_custom_call.1} parent=5 // pred_region
        // Predicated region
        $region21: #{tpu_custom_call.1} parent=19 // pred_check
          %p165 = pneg %p60
        $region22: #{tpu_custom_call.1} parent=19 // pred_check_branch
          %167 = sbr.rel (%p165) target = $region24
        $region23: #{tpu_custom_call.1} parent=19 // pred_region
          %s168 = sadd.s32 %s21, %s22
          %p169 = scmp.lt.s32.totalorder %s168, 0
          %s170 = scalar_select %p169, %s168, 0
          %s171 = smul.u32 2, %s170
          %p172 = scmp.lt.s32.totalorder %s20, 1
          %s173 = scalar_select %p172, %s20, 1
          %p174 = scmp.lt.s32.totalorder %s171, 1
          %s175 = scalar_select %p174, %s171, 1
          %s176 = smul.addr %s173, 2
          %s177 = sadd.s32 %s175, %s176
          %s178 = smul.addr %s177, 4
          %s179 = scalar_lea.vmem %s0, %s178
          %s180 = sadd.s32 %s21, %s22
          %p181 = scmp.lt.s32.totalorder %s180, 0
          %s182 = scalar_select %p181, %s180, 0
          %s183 = smul.u32 2, %s182
        $region24: #{tpu_custom_call.1} parent=19 // pred_fallthru
          _
      $region20: #{tpu_custom_call.1} parent=5 // pred_fallthru
        _
      %p184 = scmp.le.s32.totalorder 1, %s13
      %p185 = scmp.lt.s32.totalorder %s13, 3
      %p186 = pnand %p184, %p185
      %p187 = pneg %p186
      // Predicated region
      $region25: #{tpu_custom_call.1} parent=5 // pred_check
        _
      $region26: #{tpu_custom_call.1} parent=5 // pred_check_branch
        %189 = sbr.rel (%p186) target = $region28
      $region27: #{tpu_custom_call.1} parent=5 // pred_region
        %s190 = ssub.s32 %s13, 1
        %s191 = sadd.s32 %s24, %s25
        %p192 = scmp.lt.s32.totalorder %s191, 0
        %s193 = scalar_select %p192, %s191, 0
        %s194 = smul.u32 2, %s193
        %p195 = scmp.lt.s32.totalorder %s23, 1
        %s196 = scalar_select %p195, %s23, 1
        %p197 = scmp.lt.s32.totalorder %s194, 1
        %s198 = scalar_select %p197, %s194, 1
        %s199 = smul.addr %s196, 2
        %s200 = sadd.s32 %s198, %s199
        %s201 = smul.addr %s200, 4
        %s202 = scalar_lea.vmem %s0, %s201
        %p203 = pneg %p66
        %p204 = pneg %p63
        %p205 = pneg %p87
        %p206 = pneg %p84
        %p207 = pneg %p115
        %p208 = pneg %p112
        %p209 = scmp.lt.s32.totalorder %s23, 1
        %s210 = scalar_select %p209, %s23, 1
        %p211 = scmp.lt.s32.totalorder %s24, 0
        %s212 = scalar_select %p211, %s24, 0
        %s213 = smul.addr %s212, 4
        %s214 = smul.addr %s210, 4
        %s215 = sadd.s32 %s213, %s214
        %s216 = smul.addr %s215, 8
        %s217 = scalar_lea.vmem %s2, %s216
        %p218 = pneg %p143
        %p219 = pneg %p140
        %s220 = sand.u32 %s130, 1
        %s221 = scalar_lea.sflag [#allocation6], %s220
        %s222 = sand.u32 %s130, 1
        %s223 = scalar_lea.vmem [#allocation5], %s222
        %s224 = sadd.s32 %s24, %s25
        %p225 = scmp.lt.s32.totalorder %s224, 0
        %s226 = scalar_select %p225, %s224, 0
        %s227 = smul.u32 2, %s226
        %p228 = scmp.lt.s32.totalorder %s23, 1
        %s229 = scalar_select %p228, %s23, 1
        %p230 = scmp.lt.s32.totalorder %s227, 1
        %s231 = scalar_select %p230, %s227, 1
        %s232 = smul.addr %s229, 2
        %s233 = sadd.s32 %s231, %s232
        %s234 = smul.addr %s233, 4
        %s235 = scalar_lea.vmem %s0, %s234
        %s236 = sadd.s32 %s24, %s25
        %p237 = scmp.lt.s32.totalorder %s236, 0
        %s238 = scalar_select %p237, %s236, 0
        %s239 = smul.u32 2, %s238
        %p240 = scmp.lt.s32.totalorder %s23, 1
        %s241 = scalar_select %p240, %s23, 1
        %p242 = scmp.lt.s32.totalorder %s24, 0
        %s243 = scalar_select %p242, %s24, 0
        %s244 = smul.addr %s243, 4
        %s245 = smul.addr %s241, 4
        %s246 = sadd.s32 %s244, %s245
        %s247 = smul.addr %s246, 8
        %s248 = scalar_lea.vmem %s2, %s247
        %p249 = scmp.eq.s32.totalorder %s25, 0
        // Predicated region
        $region29: #{tpu_custom_call.1} parent=27 // pred_check
          %p250 = pneg %p249
        $region30: #{tpu_custom_call.1} parent=27 // pred_check_branch
          %252 = sbr.rel (%p250) target = $region32
        $region31: #{tpu_custom_call.1} parent=27 // pred_region
          %vm253 = vcmask 0
          %254 = vst.msk [vmem:[#allocation2] sm:$0x1] %vm253, -1e+30
          %255 = vst.msk [vmem:[#allocation3] sm:$0x1] %vm253, 0.0
          %256 = vst [vmem:[#allocation4] sm:$0xff] 0.0
          %257 = vst [vmem:[#allocation4 + $0x8] sm:$0xff] 0.0
          %258 = vst [vmem:[#allocation4 + $0x10] sm:$0xff] 0.0
          %259 = vst [vmem:[#allocation4 + $0x18] sm:$0xff] 0.0
        $region32: #{tpu_custom_call.1} parent=27 // pred_fallthru
          _
        %v260 = vld [vmem:[%s235] sm:$0xff]
        %v261 = vld [vmem:[%s1] sm:$0xff]
        %v262 = vld [vmem:[%s1 + $0x8] sm:$0xff]
        %v263 = vld [vmem:[%s1 + $0x10] sm:$0xff]
        %v264 = vld [vmem:[%s1 + $0x18] sm:$0xff]
        %v265 = vld [vmem:[%s1 + $0x20] sm:$0xff]
        %267 = vset.pattern.permute.xlu0 0
        %268 = vperm.xlu0 %267, %v261
        %v269 = vpop.permute.xlu0 %268
        %272 = vset.pattern.permute.xlu0 0
        %273 = vperm.xlu0 %272, %v262
        %v274 = vpop.permute.xlu0 %273
        %277 = vset.pattern.permute.xlu0 0
        %278 = vperm.xlu0 %277, %v263
        %v279 = vpop.permute.xlu0 %278
        %282 = vset.pattern.permute.xlu0 0
        %283 = vperm.xlu0 %282, %v264
        %v284 = vpop.permute.xlu0 %283
        %287 = vset.pattern.permute.xlu0 0
        %288 = vperm.xlu0 %287, %v265
        %v289 = vpop.permute.xlu0 %288
        %v292 = vperm.slane %v260, 0
        %v293 = vperm.slane %v260, 4
        %v296 = vperm.slane %v292, 0
        %v297 = vperm.slane %v293, 0
        %v298 = vmul.f32 %v269, %v296
        %v299 = vmul.f32 %v269, %v297
        %v300 = vmul.f32 %v274, %v296
        %v301 = vmul.f32 %v274, %v297
        %v302 = vmul.f32 %v279, %v296
        %v303 = vmul.f32 %v279, %v297
        %v304 = vmul.f32 %v284, %v296
        %v305 = vmul.f32 %v284, %v297
        %v306 = vmul.f32 %v289, %v296
        %v307 = vmul.f32 %v289, %v297
        %308 = vset.pattern.permute.xlu0 1
        %309 = vperm.xlu0 %308, %v261
        %v310 = vpop.permute.xlu0 %309
        %312 = vset.pattern.permute.xlu0 1
        %313 = vperm.xlu0 %312, %v262
        %v314 = vpop.permute.xlu0 %313
        %316 = vset.pattern.permute.xlu0 1
        %317 = vperm.xlu0 %316, %v263
        %v318 = vpop.permute.xlu0 %317
        %320 = vset.pattern.permute.xlu0 1
        %321 = vperm.xlu0 %320, %v264
        %v322 = vpop.permute.xlu0 %321
        %324 = vset.pattern.permute.xlu0 1
        %325 = vperm.xlu0 %324, %v265
        %v326 = vpop.permute.xlu0 %325
        %v328 = vperm.slane %v260, 1
        %v329 = vperm.slane %v260, 5
        %v332 = vperm.slane %v328, 1
        %v333 = vperm.slane %v329, 1
        %v334 = vmul.f32 %v310, %v332
        %v335 = vmul.f32 %v310, %v333
        %v336 = vmul.f32 %v314, %v332
        %v337 = vmul.f32 %v314, %v333
        %v338 = vmul.f32 %v318, %v332
        %v339 = vmul.f32 %v318, %v333
        %v340 = vmul.f32 %v322, %v332
        %v341 = vmul.f32 %v322, %v333
        %v342 = vmul.f32 %v326, %v332
        %v343 = vmul.f32 %v326, %v333
        %v344 = vadd.f32 %v298, %v334
        %v345 = vadd.f32 %v299, %v335
        %v346 = vadd.f32 %v300, %v336
        %v347 = vadd.f32 %v301, %v337
        %v348 = vadd.f32 %v302, %v338
        %v349 = vadd.f32 %v303, %v339
        %v350 = vadd.f32 %v304, %v340
        %v351 = vadd.f32 %v305, %v341
        %v352 = vadd.f32 %v306, %v342
        %v353 = vadd.f32 %v307, %v343
        %354 = vset.pattern.permute.xlu0 2
        %355 = vperm.xlu0 %354, %v261
        %v356 = vpop.permute.xlu0 %355
        %358 = vset.pattern.permute.xlu0 2
        %359 = vperm.xlu0 %358, %v262
        %v360 = vpop.permute.xlu0 %359
        %362 = vset.pattern.permute.xlu0 2
        %363 = vperm.xlu0 %362, %v263
        %v364 = vpop.permute.xlu0 %363
        %366 = vset.pattern.permute.xlu0 2
        %367 = vperm.xlu0 %366, %v264
        %v368 = vpop.permute.xlu0 %367
        %370 = vset.pattern.permute.xlu0 2
        %371 = vperm.xlu0 %370, %v265
        %v372 = vpop.permute.xlu0 %371
        %v374 = vperm.slane %v260, 2
        %v375 = vperm.slane %v260, 6
        %v378 = vperm.slane %v374, 2
        %v379 = vperm.slane %v375, 2
        %v380 = vmul.f32 %v356, %v378
        %v381 = vmul.f32 %v356, %v379
        %v382 = vmul.f32 %v360, %v378
        %v383 = vmul.f32 %v360, %v379
        %v384 = vmul.f32 %v364, %v378
        %v385 = vmul.f32 %v364, %v379
        %v386 = vmul.f32 %v368, %v378
        %v387 = vmul.f32 %v368, %v379
        %v388 = vmul.f32 %v372, %v378
        %v389 = vmul.f32 %v372, %v379
        %v390 = vadd.f32 %v344, %v380
        %v391 = vadd.f32 %v345, %v381
        %v392 = vadd.f32 %v346, %v382
        %v393 = vadd.f32 %v347, %v383
        %v394 = vadd.f32 %v348, %v384
        %v395 = vadd.f32 %v349, %v385
        %v396 = vadd.f32 %v350, %v386
        %v397 = vadd.f32 %v351, %v387
        %v398 = vadd.f32 %v352, %v388
        %v399 = vadd.f32 %v353, %v389
        %400 = vset.pattern.permute.xlu0 3
        %401 = vperm.xlu0 %400, %v261
        %v402 = vpop.permute.xlu0 %401
        %404 = vset.pattern.permute.xlu0 3
        %405 = vperm.xlu0 %404, %v262
        %v406 = vpop.permute.xlu0 %405
        %408 = vset.pattern.permute.xlu0 3
        %409 = vperm.xlu0 %408, %v263
        %v410 = vpop.permute.xlu0 %409
        %412 = vset.pattern.permute.xlu0 3
        %413 = vperm.xlu0 %412, %v264
        %v414 = vpop.permute.xlu0 %413
        %416 = vset.pattern.permute.xlu0 3
        %417 = vperm.xlu0 %416, %v265
        %v418 = vpop.permute.xlu0 %417
        %v420 = vperm.slane %v260, 3
        %v421 = vperm.slane %v260, 7
        %v424 = vperm.slane %v420, 3
        %v425 = vperm.slane %v421, 3
        %v426 = vmul.f32 %v402, %v424
        %v427 = vmul.f32 %v402, %v425
        %v428 = vmul.f32 %v406, %v424
        %v429 = vmul.f32 %v406, %v425
        %v430 = vmul.f32 %v410, %v424
        %v431 = vmul.f32 %v410, %v425
        %v432 = vmul.f32 %v414, %v424
        %v433 = vmul.f32 %v414, %v425
        %v434 = vmul.f32 %v418, %v424
        %v435 = vmul.f32 %v418, %v425
        %v436 = vadd.f32 %v390, %v426
        %v437 = vadd.f32 %v391, %v427
        %v438 = vadd.f32 %v392, %v428
        %v439 = vadd.f32 %v393, %v429
        %v440 = vadd.f32 %v394, %v430
        %v441 = vadd.f32 %v395, %v431
        %v442 = vadd.f32 %v396, %v432
        %v443 = vadd.f32 %v397, %v433
        %v444 = vadd.f32 %v398, %v434
        %v445 = vadd.f32 %v399, %v435
        %v446 = vld [vmem:[#allocation2] sm:$0x1]
        %vm447 = vcmask 1040384
        %v448 = vsel %vm447, %v444, -inf
        %v449 = vsel %vm447, %v445, -inf
        %v450 = vmax.f32 %v448, %v449
        %451 = vmax.xlane.f32.xlu0 %v450
        %v452 = vpop.xlane.xlu0 %451
        %v453 = vmax.f32 %v446, %v452
        %v454 = vsub.f32 %v446, %v453
        %v455 = vmul.f32 %v454, 1.442695
        %v456 = vpow.pop %v455
        %458 = vset.pattern.permute.xlu0 0
        %459 = vperm.xlu0 %458, %v453
        %v460 = vpop.permute.xlu0 %459
        %v462 = vperm.slane %v460, 0
        %v463 = vsub.f32 %v444, %v462
        %v464 = vsub.f32 %v445, %v462
        %v465 = vmul.f32 %v463, 1.442695
        %v466 = vpow.pop %v465
        %v467 = vmul.f32 %v464, 1.442695
        %v468 = vpow.pop %v467
        %v469 = vld [vmem:[#allocation3] sm:$0x1]
        %v470 = vmul.f32 %v456, %v469
        %v471 = vsel %vm447, %v466, 0.0
        %v472 = vsel %vm447, %v468, 0.0
        %v473 = vadd.f32 %v471, %v472
        %474 = vadd.xlane.f32.xlu0 %v473
        %v475 = vpop.xlane.xlu0 %474
        %v476 = vadd.f32 %v470, %v475
        %vm477 = vcmask 0
        %478 = vst.msk [vmem:[#allocation3] sm:$0x1] %vm477, %v476
        %v479 = vperm.slane %v466, 0
        %v480 = vmul.f32 %v436, %v479
        %v481 = vmul.f32 %v438, %v479
        %v482 = vmul.f32 %v440, %v479
        %v483 = vmul.f32 %v442, %v479
        %v484 = vperm.slane %v468, 0
        %v485 = vmul.f32 %v437, %v484
        %v486 = vmul.f32 %v439, %v484
        %v487 = vmul.f32 %v441, %v484
        %v488 = vmul.f32 %v443, %v484
        %v489 = vadd.f32 %v480, %v485
        %v490 = vadd.f32 %v481, %v486
        %v491 = vadd.f32 %v482, %v487
        %v492 = vadd.f32 %v483, %v488
        %v493 = vld [vmem:[#allocation4] sm:$0xff]
        %v494 = vld [vmem:[#allocation4 + $0x8] sm:$0xff]
        %v495 = vld [vmem:[#allocation4 + $0x10] sm:$0xff]
        %v496 = vld [vmem:[#allocation4 + $0x18] sm:$0xff]
        %v498 = vperm.slane %v456, 0
        %499 = vset.pattern.permute.xlu0 0
        %500 = vperm.xlu0 %499, %v498
        %v501 = vpop.permute.xlu0 %500
        %v503 = vmul.f32 %v501, %v493
        %v504 = vmul.f32 %v501, %v494
        %v505 = vmul.f32 %v501, %v495
        %v506 = vmul.f32 %v501, %v496
        %v507 = vadd.f32 %v503, %v489
        %v508 = vadd.f32 %v504, %v490
        %v509 = vadd.f32 %v505, %v491
        %v510 = vadd.f32 %v506, %v492
        %511 = vst [vmem:[#allocation4] sm:$0xff] %v507
        %512 = vst [vmem:[#allocation4 + $0x8] sm:$0xff] %v508
        %513 = vst [vmem:[#allocation4 + $0x10] sm:$0xff] %v509
        %514 = vst [vmem:[#allocation4 + $0x18] sm:$0xff] %v510
        %515 = vst.msk [vmem:[#allocation2] sm:$0x1] %vm477, %v453
        // Predicated region
        $region33: #{tpu_custom_call.1} parent=27 // pred_check
          %p516 = pneg %p249
        $region34: #{tpu_custom_call.1} parent=27 // pred_check_branch
          %518 = sbr.rel (%p516) target = $region36
        $region35: #{tpu_custom_call.1} parent=27 // pred_region
          %v519 = vld [vmem:[#allocation4] sm:$0xff]
          %v520 = vld [vmem:[#allocation4 + $0x8] sm:$0xff]
          %v521 = vld [vmem:[#allocation4 + $0x10] sm:$0xff]
          %v522 = vld [vmem:[#allocation4 + $0x18] sm:$0xff]
          %523 = vadd.xlane.f32.xlu0 %v519
          %v524 = vpop.xlane.xlu0 %523
          %525 = vadd.xlane.f32.xlu0 %v520
          %v526 = vpop.xlane.xlu0 %525
          %527 = vadd.xlane.f32.xlu0 %v521
          %v528 = vpop.xlane.xlu0 %527
          %529 = vadd.xlane.f32.xlu0 %v522
          %v530 = vpop.xlane.xlu0 %529
          %vm531 = vcmask 7168
          %532 = vst.msk [vmem:[%s248] sm:$0xff] %vm531, %v524
          %533 = vst.msk [vmem:[%s248 + $0x8] sm:$0xff] %vm531, %v526
          %534 = vst.msk [vmem:[%s248 + $0x10] sm:$0xff] %vm531, %v528
          %535 = vst.msk [vmem:[%s248 + $0x18] sm:$0xff] %vm531, %v530
          %v536 = vld [vmem:[#allocation2] sm:$0x1]
          %v537 = vld [vmem:[#allocation3] sm:$0x1]
          %v539 = vperm.slane %v537, 0
          %540 = vrot.lane.b32.xlu0 %v539, 1
          %v541 = vpop.permute.xlu0 %540
          %v543 = vsel %vm531, %v536, %v541
          %vm544 = vcmask 8192
          %545 = vst.msk [vmem:[%s223] sm:$0x1] %vm544, %v543
        $region36: #{tpu_custom_call.1} parent=27 // pred_fallthru
          _
        %p546 = scmp.lt.s32.totalorder %s23, 1
        %s547 = scalar_select %p546, %s23, 1
        %p548 = scmp.lt.s32.totalorder %s24, 0
        %s549 = scalar_select %p548, %s24, 0
        %s550 = smul.addr %s549, 4
        %s551 = smul.addr %s547, 4
        %s552 = sadd.s32 %s550, %s551
        %s553 = smul.addr %s552, 8
        %s554 = scalar_lea.vmem %s2, %s553
        %s555 = sand.u32 %s130, 1
        %s556 = scalar_lea.sflag [#allocation6], %s555
        %s557 = sand.u32 %s130, 1
        %s558 = scalar_lea.vmem [#allocation5], %s557
        // Predicated region
        $region37: #{tpu_custom_call.1} parent=27 // pred_check
          %p559 = pneg %p112
        $region38: #{tpu_custom_call.1} parent=27 // pred_check_branch
          %561 = sbr.rel (%p559) target = $region40
        $region39: #{tpu_custom_call.1} parent=27 // pred_region
          _
        $region40: #{tpu_custom_call.1} parent=27 // pred_fallthru
          _
        // Predicated region
        $region41: #{tpu_custom_call.1} parent=27 // pred_check
          %p562 = pneg %p140
        $region42: #{tpu_custom_call.1} parent=27 // pred_check_branch
          %564 = sbr.rel (%p562) target = $region44
        $region43: #{tpu_custom_call.1} parent=27 // pred_region
          %566 = vsyncadd %s556, 0
          %s567 = sadd.s32 %s24, %s23
          %s568 = scalar_lea.hbm %s3, %s567
          %s570 = sshll.u32 %s558, 4
          %s571 = int_to_ptr.vmem [resolvable:$true] %s570
          %s572 = sshll.u32 %s568, 4
          %s573 = int_to_ptr.hbm [resolvable:$true] %s572
          %575 = dma.vmem_to_hbm [thread:$0]  %s571, 16, %s573, %s556
        $region44: #{tpu_custom_call.1} parent=27 // pred_fallthru
          _
      $region28: #{tpu_custom_call.1} parent=5 // pred_fallthru
        _
      %p576 = scmp.le.s32.totalorder 2, %s13
      // Predicated region
      $region45: #{tpu_custom_call.1} parent=5 // pred_check
        %p577 = pneg %p576
      $region46: #{tpu_custom_call.1} parent=5 // pred_check_branch
        %579 = sbr.rel (%p577) target = $region48
      $region47: #{tpu_custom_call.1} parent=5 // pred_region
        %s580 = ssub.s32 %s13, 2
        // Predicated region
        $region49: #{tpu_custom_call.1} parent=47 // pred_check
          %p581 = pneg %p118
        $region50: #{tpu_custom_call.1} parent=47 // pred_check_branch
          %583 = sbr.rel (%p581) target = $region52
        $region51: #{tpu_custom_call.1} parent=47 // pred_region
          %p584 = scmp.lt.s32.totalorder %s26, 1
          %s585 = scalar_select %p584, %s26, 1
          %p586 = scmp.lt.s32.totalorder %s27, 0
          %s587 = scalar_select %p586, %s27, 0
          %s588 = smul.addr %s587, 4
          %s589 = smul.addr %s585, 4
          %s590 = sadd.s32 %s588, %s589
          %s591 = smul.addr %s590, 8
          %s592 = scalar_lea.vmem %s2, %s591
        $region52: #{tpu_custom_call.1} parent=47 // pred_fallthru
          _
        // Predicated region
        $region53: #{tpu_custom_call.1} parent=47 // pred_check
          %p593 = pneg %p146
        $region54: #{tpu_custom_call.1} parent=47 // pred_check_branch
          %595 = sbr.rel (%p593) target = $region56
        $region55: #{tpu_custom_call.1} parent=47 // pred_region
          %s596 = sand.u32 %s131, 1
          %s597 = scalar_lea.sflag [#allocation6], %s596
          %s598 = sand.u32 %s131, 1
          %s599 = scalar_lea.vmem [#allocation5], %s598
          %601 = dma.done %s597, 16
        $region56: #{tpu_custom_call.1} parent=47 // pred_fallthru
          _
      $region48: #{tpu_custom_call.1} parent=5 // pred_fallthru
        _
    $region6: #{tpu_custom_call.1} parent=1 // loop_footer
      %s17 = sadd.s32 1, %s13
    $region7: #{tpu_custom_call.1} parent=1 // loop_footer_branch
      %12 = sbr.rel target = $region3
    $region8: #{tpu_custom_call.1} parent=1 // loop_exit
      _
    %602 = vsyncpa [#allocation6], 1
    %s603 = scalar_lea.sflag [#allocation6], 1
    %604 = vsyncpa %s603, 1

</llo_original>
